<compile_context>
chip_gen: v7x
topology: tpu7x:2x2x1
jax: 0.10.0
libtpu: 0.0.40
codegen_flags: <defaults>
</compile_context>

<pallas_src>
import jax
import jax.numpy as jnp
import numpy as np
from jax.experimental import pallas as pl
from jax.experimental.pallas import tpu as pltpu

BN_EPS = 1e-5
LEAKY_SLOPE = 0.01  # nn.LeakyReLU default


def _stats_kernel(x_ref, w_ref, stats_ref):
    # x_ref:     (1, Cin, T)   one NCHW pixel tile (channels on sublanes)
    # w_ref:     (Cout, Cin)   1x1 conv weight
    # stats_ref: (1, Cout, 2)  per-tile partial [sum(y), sum(y^2)] per channel
    y = jnp.dot(w_ref[...], x_ref[0], preferred_element_type=jnp.float32)  # (Cout, T)
    s1 = jnp.sum(y, axis=1, keepdims=True)        # (Cout, 1)
    s2 = jnp.sum(y * y, axis=1, keepdims=True)    # (Cout, 1)
    stats_ref[0] = jnp.concatenate([s1, s2], axis=1)


def _norm_kernel(x_ref, w_ref, scale_ref, shift_ref, o_ref):
    # x_ref:   (1, Cin, T);  w_ref: (Cout, Cin)
    # scale_ref/shift_ref: (Cout, 1) per-channel fused BN scale/shift
    # o_ref:   (1, Cout, T)  lane-dense output tile
    y = jnp.dot(w_ref[...], x_ref[0], preferred_element_type=jnp.float32)  # (Cout, T)
    z = y * scale_ref[...] + shift_ref[...]
    o_ref[0] = jnp.where(z >= 0, z, LEAKY_SLOPE * z)


def _pick_hw_tile(hw, target=8192):
    """Largest multiple of 128 that divides hw and is <= target, else hw itself."""
    if hw % 128 != 0:
        return hw  # must equal the full dim if not 128-aligned
    t = min(target, hw)
    t -= t % 128
    while t > 0 and hw % t != 0:
        t -= 128
    return t if t > 0 else hw


def conv_adapter(x_nchw, weight, bias, gamma=None, beta=None, bn=True,
                 hw_tile_target=8192):
    """x_nchw: (N, Cin, H, W); weight: (Cout, Cin, 1, 1); bias/gamma/beta: (Cout,)."""
    N, Cin, H, W = x_nchw.shape
    Cout = weight.shape[0]
    HW = H * W
    T = _pick_hw_tile(HW, hw_tile_target)
    num_t = HW // T
    grid = (N, num_t)

    x3 = x_nchw.reshape(N, Cin, HW).astype(jnp.float32)   # free reshape, no transpose
    w2 = weight.reshape(Cout, Cin).astype(jnp.float32)

    x_spec = pl.BlockSpec((1, Cin, T), lambda n, t: (n, 0, t))
    w_spec = pl.BlockSpec((Cout, Cin), lambda n, t: (0, 0))        # fetched once
    vec_spec = pl.BlockSpec((Cout, 1), lambda n, t: (0, 0))        # fetched once
    parallel = pltpu.CompilerParams(dimension_semantics=("parallel", "parallel"))
    matmul_flops = 2 * N * HW * Cin * Cout

    if bn:
        # Pass 1: per-tile partial statistics (each grid step owns its output
        # block -> fully parallel / megacore-safe); tiny tree-reduce below.
        stats = pl.pallas_call(
            _stats_kernel,
            out_shape=jax.ShapeDtypeStruct((N * num_t, Cout, 2), jnp.float32),
            grid=grid,
            in_specs=[x_spec, w_spec],
            out_specs=pl.BlockSpec((1, Cout, 2),
                                   lambda n, t: (n * num_t + t, 0, 0)),
            compiler_params=parallel,
            cost_estimate=pl.CostEstimate(
                flops=matmul_flops,
                transcendentals=0,
                bytes_accessed=int(x3.size * 4)),
        )(x3, w2)

        totals = jnp.sum(stats, axis=0)                 # (Cout, 2)
        m = float(N * HW)
        mean = totals[:, 0] / m                         # mean of Wx (bias cancels)
        var = jnp.maximum(totals[:, 1] / m - mean * mean, 0.0)   # biased, as PyTorch
        inv_std = jax.lax.rsqrt(var + BN_EPS)
        scale = gamma.astype(jnp.float32) * inv_std
        shift = beta.astype(jnp.float32) - mean * scale
    else:
        # No BN: out = leaky(Wx + b) -> same pass-2 kernel with scale=1, shift=b.
        scale = jnp.ones((Cout,), jnp.float32)
        shift = bias.astype(jnp.float32)

    out3 = pl.pallas_call(
        _norm_kernel,
        out_shape=jax.ShapeDtypeStruct((N, Cout, HW), jnp.float32),
        grid=grid,
        in_specs=[x_spec, w_spec, vec_spec, vec_spec],
        out_specs=pl.BlockSpec((1, Cout, T), lambda n, t: (n, 0, t)),
        compiler_params=parallel,
        cost_estimate=pl.CostEstimate(
            flops=matmul_flops,
            transcendentals=0,
            bytes_accessed=int((x3.size + N * Cout * HW) * 4)),
    )(x3, w2, scale.reshape(Cout, 1), shift.reshape(Cout, 1))

    return out3.reshape(N, Cout, H, W)


def conv_adapter_ref(x_nchw, weight, bias, gamma, beta):
    """Pure-JAX reference (matches PyTorch train-mode forward, with conv bias)."""
    Cout, Cin = weight.shape[0], weight.shape[1]
    w2d = weight.reshape(Cout, Cin)
    y = jnp.einsum("nchw,oc->nohw", x_nchw, w2d) + bias[None, :, None, None]
    mean = jnp.mean(y, axis=(0, 2, 3), keepdims=True)
    var = jnp.mean((y - mean) ** 2, axis=(0, 2, 3), keepdims=True)
    y_bn = (y - mean) * jax.lax.rsqrt(var + BN_EPS)
    y_bn = y_bn * gamma[None, :, None, None] + beta[None, :, None, None]
    return jnp.where(y_bn >= 0, y_bn, LEAKY_SLOPE * y_bn)


if __name__ == "__main__":
    key = jax.random.PRNGKey(0)
    k_x, k_w, k_b = jax.random.split(key, 3)

    N, Cin, Cout, H, W = 2, 4, 8, 16, 16

    x = jax.random.normal(k_x, (N, Cin, H, W), dtype=jnp.float32)

    # Deterministic PyTorch-like init: Conv2d uniform(+-1/sqrt(fan_in)); BN gamma=1, beta=0.
    bound = 1.0 / np.sqrt(Cin * 1 * 1)
    weight = jax.random.uniform(k_w, (Cout, Cin, 1, 1), minval=-bound, maxval=bound)
    bias = jax.random.uniform(k_b, (Cout,), minval=-bound, maxval=bound)
    gamma = jnp.ones((Cout,), dtype=jnp.float32)
    beta = jnp.zeros((Cout,), dtype=jnp.float32)

    out = jax.jit(conv_adapter)(x, weight, bias, gamma, beta)
    out = jax.block_until_ready(out)

    ref = conv_adapter_ref(x, weight, bias, gamma, beta)
    np.testing.assert_allclose(np.asarray(out), np.asarray(ref), rtol=1e-5, atol=1e-5)
    assert out.shape == (N, Cout, H, W)

    print("KERNEL_OK")
</pallas_src>

<mosaic_0001>
module attributes {stable_mosaic.version = 11 : i64} {
  func.func @_stats_kernel(%arg0: i32, %arg1: i32, %arg2: memref<1x4x256xf32, #tpu.memory_space<vmem>>, %arg3: memref<8x4xf32, #tpu.memory_space<vmem>>, %arg4: memref<1x8x2xf32, #tpu.memory_space<vmem>>) attributes {dimension_semantics = [#tpu.dimension_semantics<parallel>, #tpu.dimension_semantics<parallel>], iteration_bounds = array<i64: 2, 1>, scalar_prefetch = 0 : i64, scratch_operands = 0 : i64, tpu.core_type = #tpu.core_type<tc>, window_params = [{transform_indices = @transform_0, window_bounds = array<i64: 1, 4, 256>}, {pipeline_mode = #tpu.pipeline_mode<synchronous>, transform_indices = @transform_1, window_bounds = array<i64: 8, 4>}, {transform_indices = @transform_2, window_bounds = array<i64: 1, 8, 2>}]} {
    %c0 = arith.constant 0 : index
    %c0_0 = arith.constant 0 : index
    %0 = vector.load %arg3[%c0, %c0_0] : memref<8x4xf32, #tpu.memory_space<vmem>>, vector<8x4xf32>
    %c0_1 = arith.constant 0 : index
    %c0_2 = arith.constant 0 : index
    %c0_3 = arith.constant 0 : index
    %1 = vector.load %arg2[%c0_1, %c0_2, %c0_3] : memref<1x4x256xf32, #tpu.memory_space<vmem>>, vector<1x4x256xf32>
    %2 = vector.shape_cast %1 : vector<1x4x256xf32> to vector<4x256xf32>
    %cst = arith.constant dense<0.000000e+00> : vector<8x256xf32>
    %3 = tpu.matmul %0, %2, %cst {dimension_numbers = #tpu.dot_dimension_numbers<[1], [0], [0], [1], [0, 0, 1, 1], [], []>} : vector<8x4xf32>, vector<4x256xf32>, vector<8x256xf32> -> vector<8x256xf32>
    %cst_4 = arith.constant dense<0.000000e+00> : vector<8xf32>
    %4 = vector.multi_reduction <add>, %3, %cst_4 [1] : vector<8x256xf32> to vector<8xf32>
    %5 = vector.shape_cast %4 : vector<8xf32> to vector<8x1xf32>
    %6 = arith.mulf %3, %3 : vector<8x256xf32>
    %cst_5 = arith.constant dense<0.000000e+00> : vector<8xf32>
    %7 = vector.multi_reduction <add>, %6, %cst_5 [1] : vector<8x256xf32> to vector<8xf32>
    %8 = vector.shape_cast %7 : vector<8xf32> to vector<8x1xf32>
    %9 = tpu.concatenate %5, %8 in 1 : vector<8x1xf32>, vector<8x1xf32> -> vector<8x2xf32>
    %c0_6 = arith.constant 0 : index
    %c0_7 = arith.constant 0 : index
    %c0_8 = arith.constant 0 : index
    %10 = vector.load %arg4[%c0_6, %c0_7, %c0_8] : memref<1x8x2xf32, #tpu.memory_space<vmem>>, vector<1x8x2xf32>
    %11 = vector.shape_cast %10 : vector<1x8x2xf32> to vector<8x2xf32>
    %12 = vector.shape_cast %9 : vector<8x2xf32> to vector<1x8x2xf32>
    tpu.vector_store %arg4[%c0_6, %c0_7, %c0_8], %12 {strides = array<i32>} : memref<1x8x2xf32, #tpu.memory_space<vmem>>, vector<1x8x2xf32>,
    return
  }
  func.func @transform_0(%arg0: i32, %arg1: i32) -> (i32, i32, i32) {
    %c0_i32 = arith.constant 0 : i32
    %c0_i32_0 = arith.constant 0 : i32
    return %arg0, %c0_i32, %arg1 : i32, i32, i32
  }
  func.func @transform_1(%arg0: i32, %arg1: i32) -> (i32, i32) {
    %c0_i32 = arith.constant 0 : i32
    %c0_i32_0 = arith.constant 0 : i32
    %c0_i32_1 = arith.constant 0 : i32
    return %c0_i32, %c0_i32_0 : i32, i32
  }
  func.func @transform_2(%arg0: i32, %arg1: i32) -> (i32, i32, i32) {
    %c1_i32 = arith.constant 1 : i32
    %0 = arith.muli %arg0, %c1_i32 : i32
    %1 = arith.addi %0, %arg1 : i32
    %c0_i32 = arith.constant 0 : i32
    %c0_i32_0 = arith.constant 0 : i32
    %c0_i32_1 = arith.constant 0 : i32
    return %1, %c0_i32, %c0_i32_0 : i32, i32, i32
  }
}

module attributes {stable_mosaic.version = 11 : i64} {
  func.func @_norm_kernel(%arg0: i32, %arg1: i32, %arg2: memref<1x4x256xf32, #tpu.memory_space<vmem>>, %arg3: memref<8x4xf32, #tpu.memory_space<vmem>>, %arg4: memref<8x1xf32, #tpu.memory_space<vmem>>, %arg5: memref<8x1xf32, #tpu.memory_space<vmem>>, %arg6: memref<1x8x256xf32, #tpu.memory_space<vmem>>) attributes {dimension_semantics = [#tpu.dimension_semantics<parallel>, #tpu.dimension_semantics<parallel>], iteration_bounds = array<i64: 2, 1>, scalar_prefetch = 0 : i64, scratch_operands = 0 : i64, tpu.core_type = #tpu.core_type<tc>, window_params = [{transform_indices = @transform_0, window_bounds = array<i64: 1, 4, 256>}, {pipeline_mode = #tpu.pipeline_mode<synchronous>, transform_indices = @transform_1, window_bounds = array<i64: 8, 4>}, {pipeline_mode = #tpu.pipeline_mode<synchronous>, transform_indices = @transform_2, window_bounds = array<i64: 8, 1>}, {pipeline_mode = #tpu.pipeline_mode<synchronous>, transform_indices = @transform_3, window_bounds = array<i64: 8, 1>}, {transform_indices = @transform_4, window_bounds = array<i64: 1, 8, 256>}]} {
    %c0 = arith.constant 0 : index
    %c0_0 = arith.constant 0 : index
    %0 = vector.load %arg3[%c0, %c0_0] : memref<8x4xf32, #tpu.memory_space<vmem>>, vector<8x4xf32>
    %c0_1 = arith.constant 0 : index
    %c0_2 = arith.constant 0 : index
    %c0_3 = arith.constant 0 : index
    %1 = vector.load %arg2[%c0_1, %c0_2, %c0_3] : memref<1x4x256xf32, #tpu.memory_space<vmem>>, vector<1x4x256xf32>
    %2 = vector.shape_cast %1 : vector<1x4x256xf32> to vector<4x256xf32>
    %cst = arith.constant dense<0.000000e+00> : vector<8x256xf32>
    %3 = tpu.matmul %0, %2, %cst {dimension_numbers = #tpu.dot_dimension_numbers<[1], [0], [0], [1], [0, 0, 1, 1], [], []>} : vector<8x4xf32>, vector<4x256xf32>, vector<8x256xf32> -> vector<8x256xf32>
    %c0_4 = arith.constant 0 : index
    %c0_5 = arith.constant 0 : index
    %4 = vector.load %arg4[%c0_4, %c0_5] : memref<8x1xf32, #tpu.memory_space<vmem>>, vector<8x1xf32>
    %5 = vector.broadcast %4 : vector<8x1xf32> to vector<8x256xf32>
    %6 = arith.mulf %3, %5 : vector<8x256xf32>
    %c0_6 = arith.constant 0 : index
    %c0_7 = arith.constant 0 : index
    %7 = vector.load %arg5[%c0_6, %c0_7] : memref<8x1xf32, #tpu.memory_space<vmem>>, vector<8x1xf32>
    %8 = vector.broadcast %7 : vector<8x1xf32> to vector<8x256xf32>
    %9 = arith.addf %6, %8 : vector<8x256xf32>
    %cst_8 = arith.constant 0.000000e+00 : f32
    %10 = vector.broadcast %cst_8 : f32 to vector<8x256xf32>
    %11 = arith.cmpf oge, %9, %10 : vector<8x256xf32>
    %cst_9 = arith.constant 0.00999999977 : f32
    %12 = vector.broadcast %cst_9 : f32 to vector<8x256xf32>
    %13 = arith.mulf %12, %9 : vector<8x256xf32>
    %14 = arith.select %11, %9, %13 : vector<8x256xi1>, vector<8x256xf32>
    %c0_10 = arith.constant 0 : index
    %c0_11 = arith.constant 0 : index
    %c0_12 = arith.constant 0 : index
    %15 = vector.load %arg6[%c0_10, %c0_11, %c0_12] : memref<1x8x256xf32, #tpu.memory_space<vmem>>, vector<1x8x256xf32>
    %16 = vector.shape_cast %15 : vector<1x8x256xf32> to vector<8x256xf32>
    %17 = vector.shape_cast %14 : vector<8x256xf32> to vector<1x8x256xf32>
    tpu.vector_store %arg6[%c0_10, %c0_11, %c0_12], %17 {strides = array<i32>} : memref<1x8x256xf32, #tpu.memory_space<vmem>>, vector<1x8x256xf32>,
    return
  }
  func.func @transform_0(%arg0: i32, %arg1: i32) -> (i32, i32, i32) {
    %c0_i32 = arith.constant 0 : i32
    %c0_i32_0 = arith.constant 0 : i32
    return %arg0, %c0_i32, %arg1 : i32, i32, i32
  }
  func.func @transform_1(%arg0: i32, %arg1: i32) -> (i32, i32) {
    %c0_i32 = arith.constant 0 : i32
    %c0_i32_0 = arith.constant 0 : i32
    %c0_i32_1 = arith.constant 0 : i32
    return %c0_i32, %c0_i32_0 : i32, i32
  }
  func.func @transform_2(%arg0: i32, %arg1: i32) -> (i32, i32) {
    %c0_i32 = arith.constant 0 : i32
    %c0_i32_0 = arith.constant 0 : i32
    %c0_i32_1 = arith.constant 0 : i32
    return %c0_i32, %c0_i32_0 : i32, i32
  }
  func.func @transform_3(%arg0: i32, %arg1: i32) -> (i32, i32) {
    %c0_i32 = arith.constant 0 : i32
    %c0_i32_0 = arith.constant 0 : i32
    %c0_i32_1 = arith.constant 0 : i32
    return %c0_i32, %c0_i32_0 : i32, i32
  }
  func.func @transform_4(%arg0: i32, %arg1: i32) -> (i32, i32, i32) {
    %c0_i32 = arith.constant 0 : i32
    %c0_i32_0 = arith.constant 0 : i32
    return %arg0, %c0_i32, %arg1 : i32, i32, i32
  }
}

</mosaic_0001>

<llo_original>
// kernel: conv_adapter.2
$region0: #{conv_adapter.2}
  #allocation0 [shape = 'u32[]', space=smem, size = 0x4, offset = 0x4, fixed_abs, tag = 'smem constant byte address 0x4 - core index']
  #allocation1 [shape = 'u32[144,128]{1,0:T(1,128)}', space=vmem, size = 0x12000, scoped, tag = 'internal scratch']
  %s0 = inlined_call_operand.vmem [shape: f32[2,4,256], index: 0, kind: input, shape index: {}]
  %s1 = inlined_call_operand.vmem [shape: f32[8,4], index: 1, kind: input, shape index: {}]
  %s2 = inlined_call_operand.vmem [shape: f32[2,8,2], index: 2, kind: output, shape index: {}]
  %s3 = sld [smem:[#allocation0]]
  $region41: #{conv_adapter.2} parent=0
    _
  %s5 = ssub.s32 1, %s3
  %s6 = scalar_select 0, %s5, %s3
  loop: start=0, step=1, limit=4
  $region2: #{conv_adapter.2} parent=0 // loop_pre_header
    _
  $region3: #{conv_adapter.2} parent=0 // loop_header
    %s8 = sphi 0, %s12
    %p9 = scmp.ge.s32.totalorder %s8, 4
    %s15 = sphi 0, %s27
    %s16 = sphi 0, %s23
    %s17 = sphi 0, %s15
    %s18 = sphi 0, %s16
    %s19 = sphi 0, %s17
    %s20 = sphi 0, %s18
    %s32 = sphi 0, %s34
    %s35 = sphi 0, %s32
    %s36 = sphi 0, %s35
    %s52 = sphi 0, %s36
    %s56 = sphi 0, %s56
    %s58 = sphi 0, %s56
    %s59 = sphi 0, %s58
    %s73 = sphi 0, %s59
    %s81 = sphi 0, %s83
    %s84 = sphi 0, %s81
    %s85 = sphi 0, %s84
    %s101 = sphi 0, %s85
  $region4: #{conv_adapter.2} parent=0 // loop_header_branch
    %11 = sbr.rel (%p9) target = $region8
  $region5: #{conv_adapter.2} parent=0 // loop_body
    %s13 = ssub.s32 %s8, 1
    %s14 = ssub.s32 %s8, 2
    %s21 = sadd.s32 1, %s16
    %p22 = scmp.ge.s32.totalorder %s21, 1
    %s23 = scalar_select %p22, 0, %s21
    %s24 = sadd.s32 1, %s15
    %s25 = scalar_select %p22, %s24, %s15
    %p26 = scmp.ge.s32.totalorder %s25, 2
    %s27 = scalar_select %p26, 0, %s25
    %s28 = ssub.s32 %s15, %s27
    %s29 = ssub.s32 %s16, %s23
    %s30 = sor.u32 %s28, %s29
    %p31 = scmp.eq.s32.totalorder %s30, 0
    %s33 = sadd.s32 %s32, 1
    %s34 = scalar_select %p31, %s32, %s33
    %p37 = pneg %p31
    %p38 = scmp.eq.s32.totalorder %s8, 1
    %p39 = por %p37, %p38
    %p40 = scmp.ne.s32.totalorder %s32, %s35
    %p41 = scmp.eq.s32.totalorder %s8, 0
    %p42 = por %p40, %p41
    %p43 = scmp.ne.s32.totalorder %s32, %s35
    %p44 = scmp.eq.s32.totalorder %s13, 1
    %p45 = por %p43, %p44
    %p46 = scmp.ne.s32.totalorder %s35, %s36
    %p47 = scmp.eq.s32.totalorder %s13, 0
    %p48 = por %p46, %p47
    %p49 = scmp.ne.s32.totalorder %s35, %s36
    %p50 = scmp.eq.s32.totalorder %s14, 1
    %p51 = por %p49, %p50
    %p53 = scmp.ne.s32.totalorder %s36, %s52
    %p54 = scmp.eq.s32.totalorder %s14, 0
    %p55 = por %p53, %p54
    %s57 = sadd.s32 %s56, 1
    %p60 = scmp.eq.s32.totalorder %s8, 1
    %p61 = scmp.ne.s32.totalorder %s56, %s58
    %p62 = scmp.eq.s32.totalorder %s8, 0
    %p63 = por %p61, %p62
    %p64 = scmp.ne.s32.totalorder %s56, %s58
    %p65 = scmp.eq.s32.totalorder %s13, 1
    %p66 = por %p64, %p65
    %p67 = scmp.ne.s32.totalorder %s58, %s59
    %p68 = scmp.eq.s32.totalorder %s13, 0
    %p69 = por %p67, %p68
    %p70 = scmp.ne.s32.totalorder %s58, %s59
    %p71 = scmp.eq.s32.totalorder %s14, 1
    %p72 = por %p70, %p71
    %p74 = scmp.ne.s32.totalorder %s59, %s73
    %p75 = scmp.eq.s32.totalorder %s14, 0
    %p76 = por %p74, %p75
    %s77 = sadd.s32 %s15, %s16
    %s78 = sadd.s32 %s27, %s23
    %s79 = ssub.s32 %s77, %s78
    %p80 = scmp.eq.s32.totalorder %s79, 0
    %s82 = sadd.s32 %s81, 1
    %s83 = scalar_select %p80, %s81, %s82
    %p86 = pneg %p80
    %p87 = scmp.eq.s32.totalorder %s8, 1
    %p88 = por %p86, %p87
    %p89 = scmp.ne.s32.totalorder %s81, %s84
    %p90 = scmp.eq.s32.totalorder %s8, 0
    %p91 = por %p89, %p90
    %p92 = scmp.ne.s32.totalorder %s81, %s84
    %p93 = scmp.eq.s32.totalorder %s13, 1
    %p94 = por %p92, %p93
    %p95 = scmp.ne.s32.totalorder %s84, %s85
    %p96 = scmp.eq.s32.totalorder %s13, 0
    %p97 = por %p95, %p96
    %p98 = scmp.ne.s32.totalorder %s84, %s85
    %p99 = scmp.eq.s32.totalorder %s14, 1
    %p100 = por %p98, %p99
    %p102 = scmp.ne.s32.totalorder %s85, %s101
    %p103 = scmp.eq.s32.totalorder %s14, 0
    %p104 = por %p102, %p103
    %p105 = scmp.le.s32.totalorder 1, %s8
    %p106 = scmp.lt.s32.totalorder %s8, 3
    %p107 = pnand %p105, %p106
    %p108 = pneg %p107
    // Predicated region
    $region9: #{conv_adapter.2} parent=5 // pred_check
      _
    $region10: #{conv_adapter.2} parent=5 // pred_check_branch
      %110 = sbr.rel (%p107) target = $region12
    $region11: #{conv_adapter.2} parent=5 // pred_region
      %s111 = ssub.s32 %s8, 1
      // Predicated region
      $region13: #{conv_adapter.2} parent=11 // pred_check
        %p112 = pneg %p69
      $region14: #{conv_adapter.2} parent=11 // pred_check_branch
        %114 = sbr.rel (%p112) target = $region16
      $region15: #{conv_adapter.2} parent=11 // pred_region
        _
      $region16: #{conv_adapter.2} parent=11 // pred_fallthru
        _
    $region12: #{conv_adapter.2} parent=5 // pred_fallthru
      _
    %p115 = scmp.lt.s32.totalorder %s8, 2
    // Predicated region
    $region17: #{conv_adapter.2} parent=5 // pred_check
      %p116 = pneg %p115
    $region18: #{conv_adapter.2} parent=5 // pred_check_branch
      %118 = sbr.rel (%p116) target = $region20
    $region19: #{conv_adapter.2} parent=5 // pred_region
      // Predicated region
      $region21: #{conv_adapter.2} parent=19 // pred_check
        %p119 = pneg %p42
      $region22: #{conv_adapter.2} parent=19 // pred_check_branch
        %121 = sbr.rel (%p119) target = $region24
      $region23: #{conv_adapter.2} parent=19 // pred_region
        %s122 = smul.u32 2, %s16
        %p123 = scmp.lt.s32.totalorder %s15, 1
        %s124 = scalar_select %p123, %s15, 1
        %p125 = scmp.lt.s32.totalorder %s122, 1
        %s126 = scalar_select %p125, %s122, 1
        %s127 = smul.addr %s124, 2
        %s128 = sadd.s32 %s126, %s127
        %s129 = smul.addr %s128, 4
        %s130 = scalar_lea.vmem %s0, %s129
        %s131 = smul.u32 2, %s16
      $region24: #{conv_adapter.2} parent=19 // pred_fallthru
        _
    $region20: #{conv_adapter.2} parent=5 // pred_fallthru
      _
    %p132 = scmp.le.s32.totalorder 1, %s8
    %p133 = scmp.lt.s32.totalorder %s8, 3
    %p134 = pnand %p132, %p133
    %p135 = pneg %p134
    // Predicated region
    $region25: #{conv_adapter.2} parent=5 // pred_check
      _
    $region26: #{conv_adapter.2} parent=5 // pred_check_branch
      %137 = sbr.rel (%p134) target = $region28
    $region27: #{conv_adapter.2} parent=5 // pred_region
      %s138 = ssub.s32 %s8, 1
      %s139 = smul.u32 2, %s18
      %p140 = scmp.lt.s32.totalorder %s17, 1
      %s141 = scalar_select %p140, %s17, 1
      %p142 = scmp.lt.s32.totalorder %s139, 1
      %s143 = scalar_select %p142, %s139, 1
      %s144 = smul.addr %s141, 2
      %s145 = sadd.s32 %s143, %s144
      %s146 = smul.addr %s145, 4
      %s147 = scalar_lea.vmem %s0, %s146
      %p148 = pneg %p48
      %p149 = pneg %p45
      %p150 = pneg %p69
      %p151 = pneg %p66
      %p152 = pneg %p97
      %p153 = pneg %p94
      %s154 = sadd.s32 %s17, %s18
      %p155 = scmp.lt.s32.totalorder %s154, 1
      %s156 = scalar_select %p155, %s154, 1
      %s157 = smul.addr %s156, 8
      %s158 = scalar_lea.vmem %s2, %s157
      %s159 = smul.u32 2, %s18
      %p160 = scmp.lt.s32.totalorder %s17, 1
      %s161 = scalar_select %p160, %s17, 1
      %p162 = scmp.lt.s32.totalorder %s159, 1
      %s163 = scalar_select %p162, %s159, 1
      %s164 = smul.addr %s161, 2
      %s165 = sadd.s32 %s163, %s164
      %s166 = smul.addr %s165, 4
      %s167 = scalar_lea.vmem %s0, %s166
      %s168 = smul.u32 2, %s18
      %s169 = sadd.s32 %s17, %s18
      %p170 = scmp.lt.s32.totalorder %s169, 1
      %s171 = scalar_select %p170, %s169, 1
      %s172 = smul.addr %s171, 8
      %s173 = scalar_lea.vmem %s2, %s172
      %s174 = sadd.s32 %s17, %s18
      %v175 = vld [vmem:[%s1] sm:$0xff]
      %v176 = vld [vmem:[%s167] sm:$0xff]
      %v178 = vcombine.high %v176, %v176
      %vm179 = vcmask 31744
      %v181 = vsel %vm179, %v175, 0
      %vm183 = vcmask 1043456
      %v184 = vsel %vm183, %v176, 0
      %v186 = vsel %vm183, %v178, 0
      %188 = vmatprep.subr.mxu0 %v186
      %189 = vmatpush1.msra.mxu0 %v184
      %190 = vmatprep.subr.mxu0 0.0
      %191 = vmatpush1.msra.mxu0 0.0
      %192 = vmatprep.subr.mxu0 0.0
      %193 = vmatpush1.msra.mxu0 0.0
      %194 = vmatprep.subr.mxu0 0.0
      %195 = vmatpush1.msra.mxu0 0.0
      %196 = vmatprep.subr.mxu0 0.0
      %197 = vmatpush1.msra.mxu0 0.0
      %198 = vmatprep.subr.mxu0 0.0
      %199 = vmatpush1.msra.mxu0 0.0
      %200 = vmatprep.subr.mxu0 0.0
      %201 = vmatpush1.msra.mxu0 0.0
      %202 = vmatprep.subr.mxu0 0.0
      %203 = vmatpush1.msra.mxu0 0.0
      %204 = vmatprep.subr.mxu0 0.0
      %205 = vmatpush1.msra.mxu0 0.0
      %206 = vmatprep.subr.mxu0 0.0
      %207 = vmatpush1.msra.mxu0 0.0
      %208 = vmatprep.subr.mxu0 0.0
      %209 = vmatpush1.msra.mxu0 0.0
      %210 = vmatprep.subr.mxu0 0.0
      %211 = vmatpush1.msra.mxu0 0.0
      %212 = vmatprep.subr.mxu0 0.0
      %213 = vmatpush1.msra.mxu0 0.0
      %214 = vmatprep.subr.mxu0 0.0
      %215 = vmatpush1.msra.mxu0 0.0
      %216 = vmatprep.subr.mxu0 0.0
      %217 = vmatpush1.msra.mxu0 0.0
      %218 = vmatprep.subr.mxu0 0.0
      %219 = vmatpush1.msra.mxu0 0.0
      %220 = vmatprep.subr.mxu0 0.0
      %221 = vmatpush1.msra.mxu0 0.0
      %222 = vmatprep.subr.mxu0 0.0
      %223 = vmatpush1.msra.mxu0 0.0
      %224 = vmatprep.subr.mxu0 0.0
      %225 = vmatpush1.msra.mxu0 0.0
      %226 = vmatprep.subr.mxu0 0.0
      %227 = vmatpush1.msra.mxu0 0.0
      %228 = vmatprep.subr.mxu0 0.0
      %229 = vmatpush1.msra.mxu0 0.0
      %230 = vmatprep.subr.mxu0 0.0
      %231 = vmatpush1.msra.mxu0 0.0
      %232 = vmatprep.subr.mxu0 0.0
      %233 = vmatpush1.msra.mxu0 0.0
      %234 = vmatprep.subr.mxu0 0.0
      %235 = vmatpush1.msra.mxu0 0.0
      %236 = vmatprep.subr.mxu0 0.0
      %237 = vmatpush1.msra.mxu0 0.0
      %238 = vmatprep.subr.mxu0 0.0
      %239 = vmatpush1.msra.mxu0 0.0
      %240 = vmatprep.subr.mxu0 0.0
      %241 = vmatpush1.msra.mxu0 0.0
      %242 = vmatprep.subr.mxu0 0.0
      %243 = vmatpush1.msra.mxu0 0.0
      %244 = vmatprep.subr.mxu0 0.0
      %245 = vmatpush1.msra.mxu0 0.0
      %246 = vmatprep.subr.mxu0 0.0
      %247 = vmatpush1.msra.mxu0 0.0
      %248 = vmatprep.subr.mxu0 0.0
      %249 = vmatpush1.msra.mxu0 0.0
      %250 = vmatprep.subr.mxu0 0.0
      %251 = vmatpush1.msra.mxu0 0.0
      %252 = vmatprep.mubr.f32.mxu0 0.0
      %253 = vmatmul.mubr.f32.gmra.mrb[0].mxu0 %v181
      %v254 = vpop.f32.mrb[0].mxu0
      %v255 = vadd.f32 0.0, %v254
      %v256 = vpop.f32.mrb[0].mxu0
      %v257 = vadd.f32 0.0, %v256
      %258 = vdwg.mxu0
      %v259 = vadd.f32 %v255, %v257
      %260 = vadd.xlane.f32.xlu0 %v259
      %v261 = vpop.xlane.xlu0 %260
      %v262 = vmul.f32 %v255, %v255
      %v263 = vmul.f32 %v257, %v257
      %v264 = vadd.f32 %v262, %v263
      %265 = vadd.xlane.f32.xlu0 %v264
      %v266 = vpop.xlane.xlu0 %265
      %vm267 = vcmask 7168
      %v268 = vsel %vm267, %v261, %v266
      %vm269 = vcmask 15360
      %270 = vst.msk [vmem:[%s173] sm:$0xff] %vm269, %v268
      %s271 = sadd.s32 %s17, %s18
      %p272 = scmp.lt.s32.totalorder %s271, 1
      %s273 = scalar_select %p272, %s271, 1
      %s274 = smul.addr %s273, 8
      %s275 = scalar_lea.vmem %s2, %s274
      // Predicated region
      $region29: #{conv_adapter.2} parent=27 // pred_check
        %p276 = pneg %p94
      $region30: #{conv_adapter.2} parent=27 // pred_check_branch
        %278 = sbr.rel (%p276) target = $region32
      $region31: #{conv_adapter.2} parent=27 // pred_region
        %s279 = sadd.s32 %s17, %s18
      $region32: #{conv_adapter.2} parent=27 // pred_fallthru
        _
    $region28: #{conv_adapter.2} parent=5 // pred_fallthru
      _
    %p280 = scmp.le.s32.totalorder 2, %s8
    // Predicated region
    $region33: #{conv_adapter.2} parent=5 // pred_check
      %p281 = pneg %p280
    $region34: #{conv_adapter.2} parent=5 // pred_check_branch
      %283 = sbr.rel (%p281) target = $region36
    $region35: #{conv_adapter.2} parent=5 // pred_region
      %s284 = ssub.s32 %s8, 2
      // Predicated region
      $region37: #{conv_adapter.2} parent=35 // pred_check
        %p285 = pneg %p100
      $region38: #{conv_adapter.2} parent=35 // pred_check_branch
        %287 = sbr.rel (%p285) target = $region40
      $region39: #{conv_adapter.2} parent=35 // pred_region
        %s288 = sadd.s32 %s19, %s20
        %p289 = scmp.lt.s32.totalorder %s288, 1
        %s290 = scalar_select %p289, %s288, 1
        %s291 = smul.addr %s290, 8
        %s292 = scalar_lea.vmem %s2, %s291
      $region40: #{conv_adapter.2} parent=35 // pred_fallthru
        _
    $region36: #{conv_adapter.2} parent=5 // pred_fallthru
      _
  $region6: #{conv_adapter.2} parent=0 // loop_footer
    %s12 = sadd.s32 1, %s8
  $region7: #{conv_adapter.2} parent=0 // loop_footer_branch
    %7 = sbr.rel target = $region3
  $region8: #{conv_adapter.2} parent=0 // loop_exit
    _

// kernel: conv_adapter.3
$region0: #{conv_adapter.3}
  #allocation0 [shape = 'u32[]', space=smem, size = 0x4, offset = 0x4, fixed_abs, tag = 'smem constant byte address 0x4 - core index']
  #allocation1 [shape = 'u32[144,128]{1,0:T(1,128)}', space=vmem, size = 0x12000, scoped, tag = 'internal scratch']
  %s0 = inlined_call_operand.vmem [shape: f32[2,4,256], index: 0, kind: input, shape index: {}]
  %s1 = inlined_call_operand.vmem [shape: f32[8,4], index: 1, kind: input, shape index: {}]
  %s2 = inlined_call_operand.vmem [shape: f32[8,1], index: 2, kind: input, shape index: {}]
  %s3 = inlined_call_operand.vmem [shape: f32[8,1], index: 3, kind: input, shape index: {}]
  %s4 = inlined_call_operand.vmem [shape: f32[2,8,256], index: 4, kind: output, shape index: {}]
  %s5 = sld [smem:[#allocation0]]
  $region49: #{conv_adapter.3} parent=0
    _
  %s7 = ssub.s32 1, %s5
  %s8 = scalar_select 0, %s7, %s5
  loop: start=0, step=1, limit=4
  $region2: #{conv_adapter.3} parent=0 // loop_pre_header
    _
  $region3: #{conv_adapter.3} parent=0 // loop_header
    %s10 = sphi 0, %s14
    %p11 = scmp.ge.s32.totalorder %s10, 4
    %s17 = sphi 0, %s29
    %s18 = sphi 0, %s25
    %s19 = sphi 0, %s17
    %s20 = sphi 0, %s18
    %s21 = sphi 0, %s19
    %s22 = sphi 0, %s20
    %s34 = sphi 0, %s36
    %s37 = sphi 0, %s34
    %s38 = sphi 0, %s37
    %s54 = sphi 0, %s38
    %s58 = sphi 0, %s58
    %s60 = sphi 0, %s58
    %s61 = sphi 0, %s60
    %s75 = sphi 0, %s61
    %s79 = sphi 0, %s79
    %s81 = sphi 0, %s79
    %s82 = sphi 0, %s81
    %s96 = sphi 0, %s82
    %s100 = sphi 0, %s100
    %s102 = sphi 0, %s100
    %s103 = sphi 0, %s102
    %s117 = sphi 0, %s103
    %s125 = sphi 0, %s127
    %s128 = sphi 0, %s125
    %s129 = sphi 0, %s128
    %s145 = sphi 0, %s129
  $region4: #{conv_adapter.3} parent=0 // loop_header_branch
    %13 = sbr.rel (%p11) target = $region8
  $region5: #{conv_adapter.3} parent=0 // loop_body
    %s15 = ssub.s32 %s10, 1
    %s16 = ssub.s32 %s10, 2
    %s23 = sadd.s32 1, %s18
    %p24 = scmp.ge.s32.totalorder %s23, 1
    %s25 = scalar_select %p24, 0, %s23
    %s26 = sadd.s32 1, %s17
    %s27 = scalar_select %p24, %s26, %s17
    %p28 = scmp.ge.s32.totalorder %s27, 2
    %s29 = scalar_select %p28, 0, %s27
    %s30 = ssub.s32 %s17, %s29
    %s31 = ssub.s32 %s18, %s25
    %s32 = sor.u32 %s30, %s31
    %p33 = scmp.eq.s32.totalorder %s32, 0
    %s35 = sadd.s32 %s34, 1
    %s36 = scalar_select %p33, %s34, %s35
    %p39 = pneg %p33
    %p40 = scmp.eq.s32.totalorder %s10, 1
    %p41 = por %p39, %p40
    %p42 = scmp.ne.s32.totalorder %s34, %s37
    %p43 = scmp.eq.s32.totalorder %s10, 0
    %p44 = por %p42, %p43
    %p45 = scmp.ne.s32.totalorder %s34, %s37
    %p46 = scmp.eq.s32.totalorder %s15, 1
    %p47 = por %p45, %p46
    %p48 = scmp.ne.s32.totalorder %s37, %s38
    %p49 = scmp.eq.s32.totalorder %s15, 0
    %p50 = por %p48, %p49
    %p51 = scmp.ne.s32.totalorder %s37, %s38
    %p52 = scmp.eq.s32.totalorder %s16, 1
    %p53 = por %p51, %p52
    %p55 = scmp.ne.s32.totalorder %s38, %s54
    %p56 = scmp.eq.s32.totalorder %s16, 0
    %p57 = por %p55, %p56
    %s59 = sadd.s32 %s58, 1
    %p62 = scmp.eq.s32.totalorder %s10, 1
    %p63 = scmp.ne.s32.totalorder %s58, %s60
    %p64 = scmp.eq.s32.totalorder %s10, 0
    %p65 = por %p63, %p64
    %p66 = scmp.ne.s32.totalorder %s58, %s60
    %p67 = scmp.eq.s32.totalorder %s15, 1
    %p68 = por %p66, %p67
    %p69 = scmp.ne.s32.totalorder %s60, %s61
    %p70 = scmp.eq.s32.totalorder %s15, 0
    %p71 = por %p69, %p70
    %p72 = scmp.ne.s32.totalorder %s60, %s61
    %p73 = scmp.eq.s32.totalorder %s16, 1
    %p74 = por %p72, %p73
    %p76 = scmp.ne.s32.totalorder %s61, %s75
    %p77 = scmp.eq.s32.totalorder %s16, 0
    %p78 = por %p76, %p77
    %s80 = sadd.s32 %s79, 1
    %p83 = scmp.eq.s32.totalorder %s10, 1
    %p84 = scmp.ne.s32.totalorder %s79, %s81
    %p85 = scmp.eq.s32.totalorder %s10, 0
    %p86 = por %p84, %p85
    %p87 = scmp.ne.s32.totalorder %s79, %s81
    %p88 = scmp.eq.s32.totalorder %s15, 1
    %p89 = por %p87, %p88
    %p90 = scmp.ne.s32.totalorder %s81, %s82
    %p91 = scmp.eq.s32.totalorder %s15, 0
    %p92 = por %p90, %p91
    %p93 = scmp.ne.s32.totalorder %s81, %s82
    %p94 = scmp.eq.s32.totalorder %s16, 1
    %p95 = por %p93, %p94
    %p97 = scmp.ne.s32.totalorder %s82, %s96
    %p98 = scmp.eq.s32.totalorder %s16, 0
    %p99 = por %p97, %p98
    %s101 = sadd.s32 %s100, 1
    %p104 = scmp.eq.s32.totalorder %s10, 1
    %p105 = scmp.ne.s32.totalorder %s100, %s102
    %p106 = scmp.eq.s32.totalorder %s10, 0
    %p107 = por %p105, %p106
    %p108 = scmp.ne.s32.totalorder %s100, %s102
    %p109 = scmp.eq.s32.totalorder %s15, 1
    %p110 = por %p108, %p109
    %p111 = scmp.ne.s32.totalorder %s102, %s103
    %p112 = scmp.eq.s32.totalorder %s15, 0
    %p113 = por %p111, %p112
    %p114 = scmp.ne.s32.totalorder %s102, %s103
    %p115 = scmp.eq.s32.totalorder %s16, 1
    %p116 = por %p114, %p115
    %p118 = scmp.ne.s32.totalorder %s103, %s117
    %p119 = scmp.eq.s32.totalorder %s16, 0
    %p120 = por %p118, %p119
    %s121 = ssub.s32 %s17, %s29
    %s122 = ssub.s32 %s18, %s25
    %s123 = sor.u32 %s121, %s122
    %p124 = scmp.eq.s32.totalorder %s123, 0
    %s126 = sadd.s32 %s125, 1
    %s127 = scalar_select %p124, %s125, %s126
    %p130 = pneg %p124
    %p131 = scmp.eq.s32.totalorder %s10, 1
    %p132 = por %p130, %p131
    %p133 = scmp.ne.s32.totalorder %s125, %s128
    %p134 = scmp.eq.s32.totalorder %s10, 0
    %p135 = por %p133, %p134
    %p136 = scmp.ne.s32.totalorder %s125, %s128
    %p137 = scmp.eq.s32.totalorder %s15, 1
    %p138 = por %p136, %p137
    %p139 = scmp.ne.s32.totalorder %s128, %s129
    %p140 = scmp.eq.s32.totalorder %s15, 0
    %p141 = por %p139, %p140
    %p142 = scmp.ne.s32.totalorder %s128, %s129
    %p143 = scmp.eq.s32.totalorder %s16, 1
    %p144 = por %p142, %p143
    %p146 = scmp.ne.s32.totalorder %s129, %s145
    %p147 = scmp.eq.s32.totalorder %s16, 0
    %p148 = por %p146, %p147
    %p149 = scmp.le.s32.totalorder 1, %s10
    %p150 = scmp.lt.s32.totalorder %s10, 3
    %p151 = pnand %p149, %p150
    %p152 = pneg %p151
    // Predicated region
    $region9: #{conv_adapter.3} parent=5 // pred_check
      _
    $region10: #{conv_adapter.3} parent=5 // pred_check_branch
      %154 = sbr.rel (%p151) target = $region12
    $region11: #{conv_adapter.3} parent=5 // pred_region
      %s155 = ssub.s32 %s10, 1
      // Predicated region
      $region13: #{conv_adapter.3} parent=11 // pred_check
        %p156 = pneg %p71
      $region14: #{conv_adapter.3} parent=11 // pred_check_branch
        %158 = sbr.rel (%p156) target = $region16
      $region15: #{conv_adapter.3} parent=11 // pred_region
        _
      $region16: #{conv_adapter.3} parent=11 // pred_fallthru
        _
      // Predicated region
      $region17: #{conv_adapter.3} parent=11 // pred_check
        %p159 = pneg %p92
      $region18: #{conv_adapter.3} parent=11 // pred_check_branch
        %161 = sbr.rel (%p159) target = $region20
      $region19: #{conv_adapter.3} parent=11 // pred_region
        _
      $region20: #{conv_adapter.3} parent=11 // pred_fallthru
        _
      // Predicated region
      $region21: #{conv_adapter.3} parent=11 // pred_check
        %p162 = pneg %p113
      $region22: #{conv_adapter.3} parent=11 // pred_check_branch
        %164 = sbr.rel (%p162) target = $region24
      $region23: #{conv_adapter.3} parent=11 // pred_region
        _
      $region24: #{conv_adapter.3} parent=11 // pred_fallthru
        _
    $region12: #{conv_adapter.3} parent=5 // pred_fallthru
      _
    %p165 = scmp.lt.s32.totalorder %s10, 2
    // Predicated region
    $region25: #{conv_adapter.3} parent=5 // pred_check
      %p166 = pneg %p165
    $region26: #{conv_adapter.3} parent=5 // pred_check_branch
      %168 = sbr.rel (%p166) target = $region28
    $region27: #{conv_adapter.3} parent=5 // pred_region
      // Predicated region
      $region29: #{conv_adapter.3} parent=27 // pred_check
        %p169 = pneg %p44
      $region30: #{conv_adapter.3} parent=27 // pred_check_branch
        %171 = sbr.rel (%p169) target = $region32
      $region31: #{conv_adapter.3} parent=27 // pred_region
        %s172 = smul.u32 2, %s18
        %p173 = scmp.lt.s32.totalorder %s17, 1
        %s174 = scalar_select %p173, %s17, 1
        %p175 = scmp.lt.s32.totalorder %s172, 1
        %s176 = scalar_select %p175, %s172, 1
        %s177 = smul.addr %s174, 2
        %s178 = sadd.s32 %s176, %s177
        %s179 = smul.addr %s178, 4
        %s180 = scalar_lea.vmem %s0, %s179
        %s181 = smul.u32 2, %s18
      $region32: #{conv_adapter.3} parent=27 // pred_fallthru
        _
    $region28: #{conv_adapter.3} parent=5 // pred_fallthru
      _
    %p182 = scmp.le.s32.totalorder 1, %s10
    %p183 = scmp.lt.s32.totalorder %s10, 3
    %p184 = pnand %p182, %p183
    %p185 = pneg %p184
    // Predicated region
    $region33: #{conv_adapter.3} parent=5 // pred_check
      _
    $region34: #{conv_adapter.3} parent=5 // pred_check_branch
      %187 = sbr.rel (%p184) target = $region36
    $region35: #{conv_adapter.3} parent=5 // pred_region
      %s188 = ssub.s32 %s10, 1
      %s189 = smul.u32 2, %s20
      %p190 = scmp.lt.s32.totalorder %s19, 1
      %s191 = scalar_select %p190, %s19, 1
      %p192 = scmp.lt.s32.totalorder %s189, 1
      %s193 = scalar_select %p192, %s189, 1
      %s194 = smul.addr %s191, 2
      %s195 = sadd.s32 %s193, %s194
      %s196 = smul.addr %s195, 4
      %s197 = scalar_lea.vmem %s0, %s196
      %p198 = pneg %p50
      %p199 = pneg %p47
      %p200 = pneg %p71
      %p201 = pneg %p68
      %p202 = pneg %p92
      %p203 = pneg %p89
      %p204 = pneg %p113
      %p205 = pneg %p110
      %p206 = pneg %p141
      %p207 = pneg %p138
      %s208 = smul.u32 2, %s20
      %p209 = scmp.lt.s32.totalorder %s19, 1
      %s210 = scalar_select %p209, %s19, 1
      %p211 = scmp.lt.s32.totalorder %s208, 1
      %s212 = scalar_select %p211, %s208, 1
      %s213 = smul.addr %s210, 2
      %s214 = sadd.s32 %s212, %s213
      %s215 = smul.addr %s214, 8
      %s216 = scalar_lea.vmem %s4, %s215
      %s217 = smul.u32 2, %s20
      %p218 = scmp.lt.s32.totalorder %s19, 1
      %s219 = scalar_select %p218, %s19, 1
      %p220 = scmp.lt.s32.totalorder %s217, 1
      %s221 = scalar_select %p220, %s217, 1
      %s222 = smul.addr %s219, 2
      %s223 = sadd.s32 %s221, %s222
      %s224 = smul.addr %s223, 4
      %s225 = scalar_lea.vmem %s0, %s224
      %s226 = smul.u32 2, %s20
      %s227 = smul.u32 2, %s20
      %p228 = scmp.lt.s32.totalorder %s19, 1
      %s229 = scalar_select %p228, %s19, 1
      %p230 = scmp.lt.s32.totalorder %s227, 1
      %s231 = scalar_select %p230, %s227, 1
      %s232 = smul.addr %s229, 2
      %s233 = sadd.s32 %s231, %s232
      %s234 = smul.addr %s233, 8
      %s235 = scalar_lea.vmem %s4, %s234
      %s236 = smul.u32 2, %s20
      %v237 = vld [vmem:[%s1] sm:$0xff]
      %v238 = vld [vmem:[%s225] sm:$0xff]
      %v240 = vcombine.high %v238, %v238
      %vm241 = vcmask 31744
      %v243 = vsel %vm241, %v237, 0
      %vm245 = vcmask 1043456
      %v246 = vsel %vm245, %v238, 0
      %v248 = vsel %vm245, %v240, 0
      %250 = vmatprep.subr.mxu0 %v248
      %251 = vmatpush1.msra.mxu0 %v246
      %252 = vmatprep.subr.mxu0 0.0
      %253 = vmatpush1.msra.mxu0 0.0
      %254 = vmatprep.subr.mxu0 0.0
      %255 = vmatpush1.msra.mxu0 0.0
      %256 = vmatprep.subr.mxu0 0.0
      %257 = vmatpush1.msra.mxu0 0.0
      %258 = vmatprep.subr.mxu0 0.0
      %259 = vmatpush1.msra.mxu0 0.0
      %260 = vmatprep.subr.mxu0 0.0
      %261 = vmatpush1.msra.mxu0 0.0
      %262 = vmatprep.subr.mxu0 0.0
      %263 = vmatpush1.msra.mxu0 0.0
      %264 = vmatprep.subr.mxu0 0.0
      %265 = vmatpush1.msra.mxu0 0.0
      %266 = vmatprep.subr.mxu0 0.0
      %267 = vmatpush1.msra.mxu0 0.0
      %268 = vmatprep.subr.mxu0 0.0
      %269 = vmatpush1.msra.mxu0 0.0
      %270 = vmatprep.subr.mxu0 0.0
      %271 = vmatpush1.msra.mxu0 0.0
      %272 = vmatprep.subr.mxu0 0.0
      %273 = vmatpush1.msra.mxu0 0.0
      %274 = vmatprep.subr.mxu0 0.0
      %275 = vmatpush1.msra.mxu0 0.0
      %276 = vmatprep.subr.mxu0 0.0
      %277 = vmatpush1.msra.mxu0 0.0
      %278 = vmatprep.subr.mxu0 0.0
      %279 = vmatpush1.msra.mxu0 0.0
      %280 = vmatprep.subr.mxu0 0.0
      %281 = vmatpush1.msra.mxu0 0.0
      %282 = vmatprep.subr.mxu0 0.0
      %283 = vmatpush1.msra.mxu0 0.0
      %284 = vmatprep.subr.mxu0 0.0
      %285 = vmatpush1.msra.mxu0 0.0
      %286 = vmatprep.subr.mxu0 0.0
      %287 = vmatpush1.msra.mxu0 0.0
      %288 = vmatprep.subr.mxu0 0.0
      %289 = vmatpush1.msra.mxu0 0.0
      %290 = vmatprep.subr.mxu0 0.0
      %291 = vmatpush1.msra.mxu0 0.0
      %292 = vmatprep.subr.mxu0 0.0
      %293 = vmatpush1.msra.mxu0 0.0
      %294 = vmatprep.subr.mxu0 0.0
      %295 = vmatpush1.msra.mxu0 0.0
      %296 = vmatprep.subr.mxu0 0.0
      %297 = vmatpush1.msra.mxu0 0.0
      %298 = vmatprep.subr.mxu0 0.0
      %299 = vmatpush1.msra.mxu0 0.0
      %300 = vmatprep.subr.mxu0 0.0
      %301 = vmatpush1.msra.mxu0 0.0
      %302 = vmatprep.subr.mxu0 0.0
      %303 = vmatpush1.msra.mxu0 0.0
      %304 = vmatprep.subr.mxu0 0.0
      %305 = vmatpush1.msra.mxu0 0.0
      %306 = vmatprep.subr.mxu0 0.0
      %307 = vmatpush1.msra.mxu0 0.0
      %308 = vmatprep.subr.mxu0 0.0
      %309 = vmatpush1.msra.mxu0 0.0
      %310 = vmatprep.subr.mxu0 0.0
      %311 = vmatpush1.msra.mxu0 0.0
      %312 = vmatprep.subr.mxu0 0.0
      %313 = vmatpush1.msra.mxu0 0.0
      %314 = vmatprep.mubr.f32.mxu0 0.0
      %315 = vmatmul.mubr.f32.gmra.mrb[0].mxu0 %v243
      %v316 = vpop.f32.mrb[0].mxu0
      %v317 = vadd.f32 0.0, %v316
      %v318 = vpop.f32.mrb[0].mxu0
      %v319 = vadd.f32 0.0, %v318
      %320 = vdwg.mxu0
      %v321 = vld [vmem:[%s2] sm:$0xff]
      %323 = vset.pattern.permute.xlu0 0
      %324 = vperm.xlu0 %323, %v321
      %v325 = vpop.permute.xlu0 %324
      %v327 = vmul.f32 %v317, %v325
      %v328 = vmul.f32 %v319, %v325
      %v329 = vld [vmem:[%s3] sm:$0xff]
      %331 = vset.pattern.permute.xlu0 0
      %332 = vperm.xlu0 %331, %v329
      %v333 = vpop.permute.xlu0 %332
      %v335 = vadd.f32 %v327, %v333
      %v336 = vadd.f32 %v328, %v333
      %vm337 = vcmp.ge.f32.partialorder %v335, 0.0
      %vm338 = vcmp.ge.f32.partialorder %v336, 0.0
      %v339 = vmul.f32 %v335, 0.01
      %v340 = vmul.f32 %v336, 0.01
      %v341 = vsel %vm337, %v335, %v339
      %v342 = vsel %vm338, %v336, %v340
      %343 = vst [vmem:[%s235] sm:$0xff] %v341
      %344 = vst [vmem:[%s235 + $0x8] sm:$0xff] %v342
      %s345 = smul.u32 2, %s20
      %p346 = scmp.lt.s32.totalorder %s19, 1
      %s347 = scalar_select %p346, %s19, 1
      %p348 = scmp.lt.s32.totalorder %s345, 1
      %s349 = scalar_select %p348, %s345, 1
      %s350 = smul.addr %s347, 2
      %s351 = sadd.s32 %s349, %s350
      %s352 = smul.addr %s351, 8
      %s353 = scalar_lea.vmem %s4, %s352
      // Predicated region
      $region37: #{conv_adapter.3} parent=35 // pred_check
        %p354 = pneg %p138
      $region38: #{conv_adapter.3} parent=35 // pred_check_branch
        %356 = sbr.rel (%p354) target = $region40
      $region39: #{conv_adapter.3} parent=35 // pred_region
        %s357 = smul.u32 2, %s20
      $region40: #{conv_adapter.3} parent=35 // pred_fallthru
        _
    $region36: #{conv_adapter.3} parent=5 // pred_fallthru
      _
    %p358 = scmp.le.s32.totalorder 2, %s10
    // Predicated region
    $region41: #{conv_adapter.3} parent=5 // pred_check
      %p359 = pneg %p358
    $region42: #{conv_adapter.3} parent=5 // pred_check_branch
      %361 = sbr.rel (%p359) target = $region44
    $region43: #{conv_adapter.3} parent=5 // pred_region
      %s362 = ssub.s32 %s10, 2
      // Predicated region
      $region45: #{conv_adapter.3} parent=43 // pred_check
        %p363 = pneg %p144
      $region46: #{conv_adapter.3} parent=43 // pred_check_branch
        %365 = sbr.rel (%p363) target = $region48
      $region47: #{conv_adapter.3} parent=43 // pred_region
        %s366 = smul.u32 2, %s22
        %p367 = scmp.lt.s32.totalorder %s21, 1
        %s368 = scalar_select %p367, %s21, 1
        %p369 = scmp.lt.s32.totalorder %s366, 1
        %s370 = scalar_select %p369, %s366, 1
        %s371 = smul.addr %s368, 2
        %s372 = sadd.s32 %s370, %s371
        %s373 = smul.addr %s372, 8
        %s374 = scalar_lea.vmem %s4, %s373
      $region48: #{conv_adapter.3} parent=43 // pred_fallthru
        _
    $region44: #{conv_adapter.3} parent=5 // pred_fallthru
      _
  $region6: #{conv_adapter.3} parent=0 // loop_footer
    %s14 = sadd.s32 1, %s10
  $region7: #{conv_adapter.3} parent=0 // loop_footer_branch
    %9 = sbr.rel target = $region3
  $region8: #{conv_adapter.3} parent=0 // loop_exit
    _

</llo_original>
